<compile_context>
chip_gen: v6e
topology: v6e:2x2x1
jax: 0.10.0
libtpu: 0.0.40
codegen_flags: <defaults>
</compile_context>

<pallas_src>
import jax
import jax.numpy as jnp
from jax.experimental import pallas as pl
from jax.experimental.pallas import tpu as pltpu


# Lane-dense last-dim candidates (multiples of 128 -> unmasked stores).
_LANE_CHOICES = (512, 256, 128)

# When the GRL backward runs inside the same jit as the op producing the
# cotangent, a plain `-coeff * g` lets XLA fuse the scale into that producer
# and skip the HBM round trip entirely (strictly better than any standalone
# kernel).  Flip this off in that situation; default keeps the Pallas path.
USE_PALLAS_BACKWARD = True


def _chip_block_config():
    """Per-generation (block_bytes, vmem_limit_bytes) for this HBM-bound op."""
    kind = ""
    try:
        kind = jax.devices()[0].device_kind.lower()
    except Exception:
        pass
    if "v7" in kind or "7x" in kind:
        # 2 TCs @ ~3.2 TB/s, 64 MiB physical VMEM: 8 MiB blocks amortize the
        # ~0.35 us/step overhead; scoped-VMEM default (32 MiB) must be raised.
        return 8 << 20, 48 << 20
    if "v6" in kind or "trillium" in kind:
        # ~1.4 TB/s: 4 MiB blocks; 16 MiB double-buffered in+out fits the
        # 32 MiB scoped default.
        return 4 << 20, None
    # v5e (16 MiB scoped default) and unknown chips: conservative 2 MiB block.
    return 2 << 20, None


# ----------------------------- Pallas kernel --------------------------------

def _grl_bwd_kernel(scale_ref, g_ref, o_ref):
    # Single fused VPU multiply.  Cast the f32 SMEM scalar to the gradient
    # dtype so bf16/int8 tiles are not promoted to f32 (halves live vreg
    # footprint; free even though this kernel is HBM-bound).
    s = scale_ref[0].astype(g_ref.dtype)
    o_ref[...] = (g_ref[...] * s).astype(o_ref.dtype)


def _bwd_pallas(g, neg_coeff):
    """grad_in = neg_coeff * grad_out at the 1 read + 1 write HBM floor."""
    total = g.size
    if total == 0:                       # empty-gradient edge case
        return g

    # Pick a lane width that divides the element count exactly: no padding,
    # no post-slice (each would be a full extra HBM read+write of g).
    lane = None
    for cand in _LANE_CHOICES:
        if total % cand == 0:
            lane = cand
            break
    if lane is None or not USE_PALLAS_BACKWARD:
        # Ragged element count (or fusion preferred): a plain fused
        # elementwise multiply is already at the HBM roofline.
        return (g * neg_coeff).astype(g.dtype)

    orig_shape = g.shape
    rows = total // lane
    g2 = g.reshape(rows, lane)           # contiguous reshape: free

    # dtype-aware sublane alignment: 8 rows f32, 16 bf16, 32 int8/fp8.
    itemsize = g.dtype.itemsize
    align = max(8, 32 // max(itemsize, 1))

    block_bytes, vmem_limit = _chip_block_config()
    cap = max(align, (block_bytes // (lane * itemsize)) // align * align)

    if rows <= align:
        # Single full-array block (block_shape == array dims is always legal).
        block_rows = rows
    else:
        # Guarantee >= 2 grid steps so a 2-TensorCore chip (v7x) can split
        # the "parallel" axis, then cap at the per-chip VMEM budget.
        half = ((rows + 1) // 2 + align - 1) // align * align
        block_rows = max(align, min(cap, half))
        block_rows = min(block_rows, rows)

    grid = (pl.cdiv(rows, block_rows),)  # ragged last block handled by Pallas

    # Runtime scalar in SMEM -> coeff may be traced; no recompile per value.
    scale = jnp.asarray(neg_coeff, dtype=jnp.float32).reshape(1)

    out2 = pl.pallas_call(
        _grl_bwd_kernel,
        out_shape=jax.ShapeDtypeStruct((rows, lane), g.dtype),
        grid_spec=pl.GridSpec(
            grid=grid,
            in_specs=[
                pl.BlockSpec(memory_space=pltpu.MemorySpace.SMEM),
                pl.BlockSpec((block_rows, lane), lambda i: (i, 0)),
            ],
            out_specs=pl.BlockSpec((block_rows, lane), lambda i: (i, 0)),
        ),
        input_output_aliases={1: 0},     # scale the gradient in place
        compiler_params=pltpu.CompilerParams(
            dimension_semantics=("parallel",),
            vmem_limit_bytes=vmem_limit),
    )(scale, g2)

    return out2.reshape(orig_shape)


# ------------------------------ custom_vjp -----------------------------------

@jax.custom_vjp
def _gradient_reverse(x, coeff):
    # Forward is identity; no kernel launch, no extra HBM traffic.
    return x


def _grl_vjp_fwd(x, coeff):
    return x, coeff


def _grl_vjp_bwd(coeff, g):
    # grad wrt x = -coeff * g; coeff itself gets zero gradient.
    return _bwd_pallas(g, -coeff), jnp.zeros_like(coeff)


_gradient_reverse.defvjp(_grl_vjp_fwd, _grl_vjp_bwd)


def gradient_reverse(x, coeff=1.0):
    """Identity forward, gradient-reversing backward (grad = -coeff * g)."""
    return _gradient_reverse(x, jnp.asarray(coeff, dtype=jnp.float32))


class GradientReverseLayer:
    """JAX/Pallas counterpart of the PyTorch GradientReverseLayer module."""

    def __call__(self, x, coeff=1.0):
        return gradient_reverse(x, coeff)


# --------------------------------- main --------------------------------------

if __name__ == "__main__":
    key = jax.random.PRNGKey(0)
    x = jax.random.normal(key, (2, 4, 16, 16), dtype=jnp.float32)  # NCHW

    layer = GradientReverseLayer()
    coeff = 0.5

    # Forward: identity.
    y = jax.block_until_ready(layer(x, coeff))
    assert y.shape == x.shape and y.dtype == x.dtype
    assert jnp.allclose(y, x), "forward must be identity"

    # Backward: gradient is reversed and scaled by coeff (Pallas path,
    # 2048 elems -> (4, 512) slab, single block).
    loss_fn = lambda a: jnp.sum(gradient_reverse(a, coeff) * 2.0)
    g = jax.block_until_ready(jax.grad(loss_fn)(x))
    assert jnp.allclose(g, -coeff * 2.0 * jnp.ones_like(x)), \
        "backward must be -coeff * g"

    # Traced coeff inside jit (GRL coeff ramps every step) -> same compiled
    # kernel, no recompile per coeff value.
    grad_fn = jax.jit(jax.grad(lambda a, c: jnp.sum(gradient_reverse(a, c))))
    g2 = jax.block_until_ready(grad_fn(x, jnp.float32(0.25)))
    assert jnp.allclose(g2, -0.25 * jnp.ones_like(x))

    # bf16 cotangent, enough rows for a multi-step grid (rows=32, align=16).
    xb = jax.random.normal(key, (8, 4, 16, 32), dtype=jnp.bfloat16)
    gb = jax.block_until_ready(
        jax.grad(lambda a: jnp.sum(
            gradient_reverse(a, 2.0).astype(jnp.float32)))(xb))
    assert jnp.allclose(gb.astype(jnp.float32),
                        -2.0 * jnp.ones(xb.shape, jnp.float32))

    # Ragged element count (105 elems): exercises the fused-jnp fallback
    # (no pad / no slice -> no extra HBM traffic).
    xu = jax.random.normal(key, (3, 5, 7), dtype=jnp.float32)
    gu = jax.block_until_ready(
        jax.grad(lambda a: jnp.sum(gradient_reverse(a, 1.5)))(xu))
    assert jnp.allclose(gu, -1.5 * jnp.ones_like(xu))

    print("KERNEL_OK")
</pallas_src>

<mosaic_0001>
module attributes {stable_mosaic.version = 11 : i64} {
  func.func @_grl_bwd_kernel(%arg0: i32, %arg1: memref<1xf32, #tpu.memory_space<smem>>, %arg2: memref<4x512xf32, #tpu.memory_space<vmem>>, %arg3: memref<4x512xf32, #tpu.memory_space<vmem>>) attributes {dimension_semantics = [#tpu.dimension_semantics<parallel>], iteration_bounds = array<i64: 1>, scalar_prefetch = 0 : i64, scratch_operands = 0 : i64, tpu.core_type = #tpu.core_type<tc>, window_params = [{transform_indices = @transform_0, window_bounds = array<i64: 1>}, {transform_indices = @transform_1, window_bounds = array<i64: 4, 512>}, {transform_indices = @transform_2, window_bounds = array<i64: 4, 512>}]} {
    %c0 = arith.constant 0 : index
    %0 = memref.load %arg1[%c0] : memref<1xf32, #tpu.memory_space<smem>>
    %c0_0 = arith.constant 0 : index
    %c0_1 = arith.constant 0 : index
    %1 = vector.load %arg2[%c0_0, %c0_1] : memref<4x512xf32, #tpu.memory_space<vmem>>, vector<4x512xf32>
    %2 = vector.broadcast %0 : f32 to vector<4x512xf32>
    %3 = arith.mulf %1, %2 : vector<4x512xf32>
    %c0_2 = arith.constant 0 : index
    %c0_3 = arith.constant 0 : index
    %4 = vector.load %arg3[%c0_2, %c0_3] : memref<4x512xf32, #tpu.memory_space<vmem>>, vector<4x512xf32>
    tpu.vector_store %arg3[%c0_2, %c0_3], %3 {strides = array<i32>} : memref<4x512xf32, #tpu.memory_space<vmem>>, vector<4x512xf32>,
    return
  }
  func.func @transform_0(%arg0: i32) -> i32 {
    %c0_i32 = arith.constant 0 : i32
    %c0_i32_0 = arith.constant 0 : i32
    return %c0_i32 : i32
  }
  func.func @transform_1(%arg0: i32) -> (i32, i32) {
    %c0_i32 = arith.constant 0 : i32
    %c0_i32_0 = arith.constant 0 : i32
    return %arg0, %c0_i32 : i32, i32
  }
  func.func @transform_2(%arg0: i32) -> (i32, i32) {
    %c0_i32 = arith.constant 0 : i32
    %c0_i32_0 = arith.constant 0 : i32
    return %arg0, %c0_i32 : i32, i32
  }
}

</mosaic_0001>

<llo_original>
// kernel: tpu_custom_call.1
$region0: #{tpu_custom_call.1}
  #allocation0 [shape = 'u32[]', space=smem, size = 0x4, offset = 0x4, fixed_abs, tag = 'smem constant byte address 0x4 - core index']
  #allocation1 [shape = 'u32[144,128]{1,0:T(1,128)}', space=vmem, size = 0x12000, scoped, tag = 'internal scratch']
  #allocation2 [shape = 'f32[1]{0:T(128)S(6)}', space=smem, size = 0x200, scoped, tag = 'scoped memory for tpu_custom_call.1']
  %s0 = inlined_call_operand.<no memory space> [shape: f32[1], index: 0, kind: input, shape index: {}]
  %s1 = inlined_call_operand.hbm [shape: f32[4,512], index: 1, kind: input, shape index: {}, may-alias: {1,2}]
  %s2 = inlined_call_operand.hbm [shape: f32[4,512], index: 2, kind: output, shape index: {}, may-alias: {1,2}]
  %s3 = sld [smem:[#allocation0]]
  $region22: #{tpu_custom_call.1} parent=0
    _
  %s5 = ssub.s32 1, %s3
  %s6 = scalar_select 0, %s5, %s3
  %7 = sst [smem:[#allocation2]] %s0
  $region1: #{tpu_custom_call.1} parent=0
    #allocation3 [shape = 'u8[8192]{0}', space=vmem, size = 0x2000, scoped, tag = 'input window, operand 1, single buffered']
    #allocation4 [shape = 's32[1]{0}', space=sflag, size = 0x4, scoped, tag = 'scoped memory for tpu_custom_call.1']
    #allocation5 [shape = 's32[1]{0}', space=sflag, size = 0x4, scoped, tag = 'scoped memory for tpu_custom_call.1']
    #allocation6 [shape = 'u8[8192]{0}', space=vmem, size = 0x2000, scoped, tag = 'output window, operand 0, single buffered']
    %8 = vsyncpa [#allocation4], 0
    %9 = vsyncpa [#allocation5], 0
    // Predicated region
    $region2: #{tpu_custom_call.1} parent=1 // pred_check
      _
    $region3: #{tpu_custom_call.1} parent=1 // pred_check_branch
      %11 = sbr.rel (0) target = $region5
    $region4: #{tpu_custom_call.1} parent=1 // pred_region
      _
    $region5: #{tpu_custom_call.1} parent=1 // pred_fallthru
      _
    // Predicated region
    $region6: #{tpu_custom_call.1} parent=1 // pred_check
      _
    $region7: #{tpu_custom_call.1} parent=1 // pred_check_branch
      %13 = sbr.rel (0) target = $region9
    $region8: #{tpu_custom_call.1} parent=1 // pred_region
      %s15 = ssub.s32 256, 256
      %16 = vsyncadd [#allocation4], %s15
      %s18 = sshll.u32 [#allocation3], 4
      %s19 = int_to_ptr.vmem [resolvable:$true] %s18
      %21 = dma.hbm_to_vmem [thread:$0]  %s1, 256, %s19, [#allocation4]
    $region9: #{tpu_custom_call.1} parent=1 // pred_fallthru
      _
    // Predicated region
    $region10: #{tpu_custom_call.1} parent=1 // pred_check
      _
    $region11: #{tpu_custom_call.1} parent=1 // pred_check_branch
      %23 = sbr.rel (0) target = $region13
    $region12: #{tpu_custom_call.1} parent=1 // pred_region
      %24 = dma.done [#allocation4], 256
    $region13: #{tpu_custom_call.1} parent=1 // pred_fallthru
      _
    %s25 = sld [smem:[#allocation2]]
    %v26 = vld [vmem:[#allocation3] sm:$0xff]
    %v27 = vld [vmem:[#allocation3 + $0x8] sm:$0xff]
    %v28 = vstv %s25
    %v29 = vmul.f32 %v26, %v28
    %v30 = vmul.f32 %v27, %v28
    %31 = vst [vmem:[#allocation6] sm:$0xff] %v29
    %32 = vst [vmem:[#allocation6 + $0x8] sm:$0xff] %v30
    // Predicated region
    $region14: #{tpu_custom_call.1} parent=1 // pred_check
      _
    $region15: #{tpu_custom_call.1} parent=1 // pred_check_branch
      %34 = sbr.rel (0) target = $region17
    $region16: #{tpu_custom_call.1} parent=1 // pred_region
      %s36 = ssub.s32 256, 256
      %37 = vsyncadd [#allocation5], %s36
      %s39 = sshll.u32 [#allocation6], 4
      %s40 = int_to_ptr.vmem [resolvable:$true] %s39
      %42 = dma.vmem_to_hbm [thread:$0]  %s40, 256, %s2, [#allocation5]
    $region17: #{tpu_custom_call.1} parent=1 // pred_fallthru
      _
    // Predicated region
    $region18: #{tpu_custom_call.1} parent=1 // pred_check
      _
    $region19: #{tpu_custom_call.1} parent=1 // pred_check_branch
      %44 = sbr.rel (0) target = $region21
    $region20: #{tpu_custom_call.1} parent=1 // pred_region
      %45 = dma.done [#allocation5], 256
    $region21: #{tpu_custom_call.1} parent=1 // pred_fallthru
      _
    %46 = vsyncpa [#allocation4], 1
    %47 = vsyncpa [#allocation5], 1

</llo_original>
